<compile_context>
chip_gen: v7x
topology: tpu7x:2x2x1
jax: 0.10.0
libtpu: 0.0.40
codegen_flags: <defaults>
</compile_context>

<pallas_src>
import numpy as np
import jax
import jax.numpy as jnp
from jax.experimental import pallas as pl
from jax.experimental.pallas import tpu as pltpu


def _round_up(x, m):
    return ((x + m - 1) // m) * m


# ----------------------------- Pallas kernels ------------------------------ #

def _backbone_mm_kernel(x_ref, w_ref, b_ref, o_ref):
    """One M-tile of ReLU(patches @ W + b).  All operands 128-lane padded."""
    acc = jnp.dot(x_ref[...], w_ref[...], preferred_element_type=jnp.float32)
    acc = acc + b_ref[...]
    o_ref[...] = jnp.maximum(acc, 0.0).astype(o_ref.dtype)


def backbone_matmul(patches, w, b, *, tile_m):
    """(Mp, Kp) @ (Kp, Np) + b, ReLU.  M tiled & pipelined on a 'parallel' grid."""
    Mp, Kp = patches.shape
    _, Np = w.shape
    grid_m = Mp // tile_m
    return pl.pallas_call(
        _backbone_mm_kernel,
        out_shape=jax.ShapeDtypeStruct((Mp, Np), jnp.float32),
        grid=(grid_m,),
        in_specs=[pl.BlockSpec((tile_m, Kp), lambda i: (i, 0)),
                  pl.BlockSpec((Kp, Np), lambda i: (0, 0)),
                  pl.BlockSpec((1, Np), lambda i: (0, 0))],
        out_specs=pl.BlockSpec((tile_m, Np), lambda i: (i, 0)),
        compiler_params=pltpu.CompilerParams(
            dimension_semantics=("parallel",)),
    )(patches, w, b.reshape(1, Np))


def _head_resize_kernel(feat_ref, w_ref, b_ref, r_ref, o_ref):
    """Fused (classifier + aux) 1x1-conv matmul and bilinear upsample for one
    batch element.  Logits stay in VMEM; output lanes are 128-dense."""
    feat = feat_ref[0]                                              # (HoWo, Cmid_p)
    logits = jnp.dot(feat, w_ref[...],
                     preferred_element_type=jnp.float32) + b_ref[...]  # (HoWo, Cout_p)
    up = jnp.dot(r_ref[...], logits,
                 preferred_element_type=jnp.float32)                # (H*W, Cout_p)
    o_ref[0] = up.astype(o_ref.dtype)


def head_and_resize(feat3, w_heads, b_heads, resize_mat):
    """feat3: (N, Ho*Wo, Cmid_p) -> (N, H*W, Cout_p); grid over batch, parallel."""
    N, HoWo, Cmid_p = feat3.shape
    HW = resize_mat.shape[0]
    Cout_p = w_heads.shape[1]
    return pl.pallas_call(
        _head_resize_kernel,
        out_shape=jax.ShapeDtypeStruct((N, HW, Cout_p), jnp.float32),
        grid=(N,),
        in_specs=[pl.BlockSpec((1, HoWo, Cmid_p), lambda n: (n, 0, 0)),
                  pl.BlockSpec((Cmid_p, Cout_p), lambda n: (0, 0)),
                  pl.BlockSpec((1, Cout_p), lambda n: (0, 0)),
                  pl.BlockSpec((HW, HoWo), lambda n: (0, 0))],
        out_specs=pl.BlockSpec((1, HW, Cout_p), lambda n: (n, 0, 0)),
        compiler_params=pltpu.CompilerParams(
            dimension_semantics=("parallel",)),
    )(feat3, w_heads, b_heads.reshape(1, Cout_p), resize_mat)


# ------------------------------- glue (JAX) -------------------------------- #

def _bilinear_matrix(in_size, out_size):
    """Row-stochastic (out_size, in_size) matrix matching torch bilinear,
    align_corners=False (negative source coords clamped to 0)."""
    scale = in_size / out_size
    dst = np.arange(out_size)
    src = (dst + 0.5) * scale - 0.5
    src = np.maximum(src, 0.0)
    i0 = np.minimum(np.floor(src).astype(np.int64), in_size - 1)
    i1 = np.minimum(i0 + 1, in_size - 1)
    frac = (src - i0).astype(np.float32)
    W = np.zeros((out_size, in_size), dtype=np.float32)
    W[dst, i0] += (1.0 - frac)
    W[dst, i1] += frac
    return W


def _im2col_3x3_s2(x):
    """NCHW -> (N*Ho*Wo, C*9) patches for a 3x3, stride-2, pad-1 conv."""
    # TODO(synk): for large inputs, fold im2col into the backbone kernel (DMA a
    # raw input tile and accumulate 9 shifted dots) to avoid the HBM expansion.
    N, C, H, W = x.shape
    Ho = (H + 2 - 3) // 2 + 1
    Wo = (W + 2 - 3) // 2 + 1
    xp = jnp.pad(x, ((0, 0), (0, 0), (1, 1), (1, 1)))
    cols = []
    for kh in range(3):
        for kw in range(3):
            cols.append(xp[:, :, kh:kh + 2 * Ho - 1:2, kw:kw + 2 * Wo - 1:2])
    patches = jnp.stack(cols, axis=2)                        # (N, C, 9, Ho, Wo)
    patches = patches.transpose(0, 3, 4, 1, 2).reshape(N * Ho * Wo, C * 9)
    return patches, Ho, Wo


class SimpleSegmentationModelPallas:
    """Pallas analogue of _SimpleSegmentationModel with a synthetic
    backbone / classifier / aux_classifier."""

    def __init__(self, key, in_ch=4, mid_ch=32, num_classes=6, aux=True):
        k = jax.random.split(key, 6)
        s = 0.1
        self.in_ch, self.mid_ch, self.num_classes, self.aux = in_ch, mid_ch, num_classes, aux

        # unpadded weights (reference uses these)
        self.w_bb = jax.random.normal(k[0], (in_ch * 9, mid_ch), jnp.float32) * s
        self.b_bb = jax.random.normal(k[1], (mid_ch,), jnp.float32) * s
        self.w_cls = jax.random.normal(k[2], (mid_ch, num_classes), jnp.float32) * s
        self.b_cls = jax.random.normal(k[3], (num_classes,), jnp.float32) * s
        if aux:
            self.w_aux = jax.random.normal(k[4], (mid_ch, num_classes), jnp.float32) * s
            self.b_aux = jax.random.normal(k[5], (num_classes,), jnp.float32) * s

        # lane-dense padded weights (pad once at init)
        K = in_ch * 9
        n_heads = 2 if aux else 1
        self.Kp = _round_up(K, 128)
        self.Cmid_p = _round_up(mid_ch, 128)
        self.Cout_p = _round_up(n_heads * num_classes, 128)

        self.w_bb_p = jnp.zeros((self.Kp, self.Cmid_p), jnp.float32
                                ).at[:K, :mid_ch].set(self.w_bb)
        self.b_bb_p = jnp.zeros((self.Cmid_p,), jnp.float32).at[:mid_ch].set(self.b_bb)

        w_h = jnp.zeros((self.Cmid_p, self.Cout_p), jnp.float32)
        b_h = jnp.zeros((self.Cout_p,), jnp.float32)
        w_h = w_h.at[:mid_ch, :num_classes].set(self.w_cls)
        b_h = b_h.at[:num_classes].set(self.b_cls)
        if aux:
            w_h = w_h.at[:mid_ch, num_classes:2 * num_classes].set(self.w_aux)
            b_h = b_h.at[num_classes:2 * num_classes].set(self.b_aux)
        self.w_heads_p, self.b_heads_p = w_h, b_h

    @staticmethod
    def _pick_tile_m(M):
        # >=2 parallel tiles when possible (feeds both v7x TensorCores); cap at
        # 512 rows so double-buffered f32 tiles stay well inside 64 MiB VMEM.
        t = min(512, max(8, (M // 2 // 8) * 8))
        return max(8, t)

    def __call__(self, x):
        N, C, H, W = x.shape

        # ---- backbone: im2col + tiled, lane-dense matmul + ReLU ----
        patches, Ho, Wo = _im2col_3x3_s2(x)                  # (M, C*9)
        M, K = patches.shape
        tile_m = self._pick_tile_m(M)
        Mp = _round_up(M, tile_m)
        patches_p = jnp.pad(patches, ((0, Mp - M), (0, self.Kp - K)))
        feat = backbone_matmul(patches_p, self.w_bb_p, self.b_bb_p, tile_m=tile_m)
        feat3 = feat[:M].reshape(N, Ho * Wo, self.Cmid_p)    # no transpose needed

        # ---- fused heads + bilinear resize (Kronecker factor of the two 1-D
        #      bilinear matrices => one lane-dense matmul per batch element) ----
        wh = _bilinear_matrix(Ho, H)                         # (H, Ho)
        ww = _bilinear_matrix(Wo, W)                         # (W, Wo)
        resize_mat = jnp.asarray(np.kron(wh, ww))            # (H*W, Ho*Wo)
        # TODO(synk): for large output resolutions, split back into two 1-D
        # resize passes (the Kronecker matrix grows as (H*W) x (Ho*Wo)).

        y = head_and_resize(feat3, self.w_heads_p, self.b_heads_p, resize_mat)
        y = y.reshape(N, H, W, self.Cout_p)

        nc = self.num_classes
        result = {"out": jnp.transpose(y[..., :nc], (0, 3, 1, 2))}   # back to NCHW API
        if self.aux:
            result["aux"] = jnp.transpose(y[..., nc:2 * nc], (0, 3, 1, 2))
        return result


# -------------------------- pure-JAX reference ----------------------------- #

def _reference(model, x):
    N, C, H, W = x.shape
    patches, Ho, Wo = _im2col_3x3_s2(x)
    feat = jnp.maximum(patches @ model.w_bb + model.b_bb, 0.0)
    wh = jnp.asarray(_bilinear_matrix(Ho, H))
    ww = jnp.asarray(_bilinear_matrix(Wo, W))

    def head(w, b):
        lg = (feat @ w + b).reshape(N, Ho, Wo, model.num_classes).transpose(0, 3, 1, 2)
        return jnp.einsum("op,ncpq,rq->ncor", wh, lg, ww)

    out = {"out": head(model.w_cls, model.b_cls)}
    if model.aux:
        out["aux"] = head(model.w_aux, model.b_aux)
    return out


# --------------------------------- main ------------------------------------ #

if __name__ == "__main__":
    key = jax.random.PRNGKey(0)
    kx, kp = jax.random.split(key)
    x = jax.random.normal(kx, (2, 4, 16, 16), jnp.float32)   # NCHW, like PyTorch

    model = SimpleSegmentationModelPallas(kp, in_ch=4, mid_ch=32, num_classes=6, aux=True)
    result = model(x)
    jax.block_until_ready(result)

    assert result["out"].shape == (2, 6, 16, 16)
    assert result["aux"].shape == (2, 6, 16, 16)

    ref = _reference(model, x)
    for name in result:
        np.testing.assert_allclose(np.asarray(result[name]), np.asarray(ref[name]),
                                   rtol=2e-2, atol=2e-2)

    print("KERNEL_OK")
</pallas_src>

<mosaic_0001>
module attributes {stable_mosaic.version = 11 : i64} {
  func.func @_backbone_mm_kernel(%arg0: i32, %arg1: memref<64x128xf32, #tpu.memory_space<vmem>>, %arg2: memref<128x128xf32, #tpu.memory_space<vmem>>, %arg3: memref<1x128xf32, #tpu.memory_space<vmem>>, %arg4: memref<64x128xf32, #tpu.memory_space<vmem>>) attributes {dimension_semantics = [#tpu.dimension_semantics<parallel>], iteration_bounds = array<i64: 2>, scalar_prefetch = 0 : i64, scratch_operands = 0 : i64, tpu.core_type = #tpu.core_type<tc>, window_params = [{transform_indices = @transform_0, window_bounds = array<i64: 64, 128>}, {pipeline_mode = #tpu.pipeline_mode<synchronous>, transform_indices = @transform_1, window_bounds = array<i64: 128, 128>}, {pipeline_mode = #tpu.pipeline_mode<synchronous>, transform_indices = @transform_2, window_bounds = array<i64: 1, 128>}, {transform_indices = @transform_3, window_bounds = array<i64: 64, 128>}]} {
    %c0 = arith.constant 0 : index
    %c0_0 = arith.constant 0 : index
    %0 = vector.load %arg1[%c0, %c0_0] : memref<64x128xf32, #tpu.memory_space<vmem>>, vector<64x128xf32>
    %c0_1 = arith.constant 0 : index
    %c0_2 = arith.constant 0 : index
    %1 = vector.load %arg2[%c0_1, %c0_2] : memref<128x128xf32, #tpu.memory_space<vmem>>, vector<128x128xf32>
    %cst = arith.constant dense<0.000000e+00> : vector<64x128xf32>
    %2 = tpu.matmul %0, %1, %cst {dimension_numbers = #tpu.dot_dimension_numbers<[1], [0], [0], [1], [0, 0, 1, 1], [], []>} : vector<64x128xf32>, vector<128x128xf32>, vector<64x128xf32> -> vector<64x128xf32>
    %c0_3 = arith.constant 0 : index
    %c0_4 = arith.constant 0 : index
    %3 = vector.load %arg3[%c0_3, %c0_4] : memref<1x128xf32, #tpu.memory_space<vmem>>, vector<1x128xf32>
    %4 = vector.broadcast %3 : vector<1x128xf32> to vector<64x128xf32>
    %5 = arith.addf %2, %4 : vector<64x128xf32>
    %cst_5 = arith.constant 0.000000e+00 : f32
    %6 = vector.broadcast %cst_5 : f32 to vector<64x128xf32>
    %7 = arith.maximumf %5, %6 : vector<64x128xf32>
    %c0_6 = arith.constant 0 : index
    %c0_7 = arith.constant 0 : index
    %8 = vector.load %arg4[%c0_6, %c0_7] : memref<64x128xf32, #tpu.memory_space<vmem>>, vector<64x128xf32>
    tpu.vector_store %arg4[%c0_6, %c0_7], %7 {strides = array<i32>} : memref<64x128xf32, #tpu.memory_space<vmem>>, vector<64x128xf32>,
    return
  }
  func.func @transform_0(%arg0: i32) -> (i32, i32) {
    %c0_i32 = arith.constant 0 : i32
    %c0_i32_0 = arith.constant 0 : i32
    return %arg0, %c0_i32 : i32, i32
  }
  func.func @transform_1(%arg0: i32) -> (i32, i32) {
    %c0_i32 = arith.constant 0 : i32
    %c0_i32_0 = arith.constant 0 : i32
    %c0_i32_1 = arith.constant 0 : i32
    return %c0_i32, %c0_i32_0 : i32, i32
  }
  func.func @transform_2(%arg0: i32) -> (i32, i32) {
    %c0_i32 = arith.constant 0 : i32
    %c0_i32_0 = arith.constant 0 : i32
    %c0_i32_1 = arith.constant 0 : i32
    return %c0_i32, %c0_i32_0 : i32, i32
  }
  func.func @transform_3(%arg0: i32) -> (i32, i32) {
    %c0_i32 = arith.constant 0 : i32
    %c0_i32_0 = arith.constant 0 : i32
    return %arg0, %c0_i32 : i32, i32
  }
}

</mosaic_0001>

<llo_original>
// kernel: tpu_custom_call.1
$region0: #{tpu_custom_call.1}
  #allocation0 [shape = 'u32[]', space=smem, size = 0x4, offset = 0x4, fixed_abs, tag = 'smem constant byte address 0x4 - core index']
  #allocation1 [shape = 'u32[144,128]{1,0:T(1,128)}', space=vmem, size = 0x12000, scoped, tag = 'internal scratch']
  %s0 = inlined_call_operand.hbm [shape: f32[128,128], index: 0, kind: input, shape index: {}]
  %s1 = inlined_call_operand.hbm [shape: f32[128,128], index: 1, kind: input, shape index: {}]
  %s2 = inlined_call_operand.vmem [shape: f32[1,128], index: 2, kind: input, shape index: {}]
  %s3 = inlined_call_operand.hbm [shape: f32[128,128], index: 3, kind: output, shape index: {}]
  %s4 = sld [smem:[#allocation0]]
  $region53: #{tpu_custom_call.1} parent=0
    _
  %s6 = ssub.s32 1, %s4
  %s7 = scalar_select 0, %s6, %s4
  $region1: #{tpu_custom_call.1} parent=0
    #allocation2 [shape = 'u8[65536]{0}', space=vmem, size = 0x10000, scoped, tag = 'input window, operand 0']
    #allocation3 [shape = 's32[2]{0}', space=sflag, size = 0x8, scoped, tag = 'scoped memory for tpu_custom_call.1']
    #allocation4 [shape = 's32[2]{0}', space=sflag, size = 0x8, scoped, tag = 'scoped memory for tpu_custom_call.1']
    #allocation5 [shape = 'u8[65536]{0}', space=vmem, size = 0x10000, scoped, tag = 'input window, operand 1, single buffered']
    #allocation6 [shape = 's32[1]{0}', space=sflag, size = 0x4, scoped, tag = 'scoped memory for tpu_custom_call.1']
    #allocation7 [shape = 'u8[65536]{0}', space=vmem, size = 0x10000, scoped, tag = 'output window, operand 0']
    %8 = vsyncpa [#allocation3], 0
    %s9 = scalar_lea.sflag [#allocation3], 1
    %10 = vsyncpa %s9, 0
    %11 = vsyncpa [#allocation6], 0
    %12 = vsyncpa [#allocation4], 0
    %s13 = scalar_lea.sflag [#allocation4], 1
    %14 = vsyncpa %s13, 0
    loop: start=0, step=1, limit=4
    $region2: #{tpu_custom_call.1} parent=1 // loop_pre_header
      _
    $region3: #{tpu_custom_call.1} parent=1 // loop_header
      %s16 = sphi 0, %s20
      %p17 = scmp.ge.s32.totalorder %s16, 4
      %s26 = sphi 0, %s28
      %s29 = sphi 0, %s26
      %s30 = sphi 0, %s29
      %s46 = sphi 0, %s30
      %s50 = sphi 0, %s50
      %s52 = sphi 0, %s50
      %s53 = sphi 0, %s52
      %s67 = sphi 0, %s53
      %s71 = sphi 0, %s71
      %s73 = sphi 0, %s71
      %s74 = sphi 0, %s73
      %s88 = sphi 0, %s74
      %s94 = sphi 0, %s96
      %s97 = sphi 0, %s94
      %s98 = sphi 0, %s97
      %s114 = sphi 0, %s98
    $region4: #{tpu_custom_call.1} parent=1 // loop_header_branch
      %19 = sbr.rel (%p17) target = $region8
    $region5: #{tpu_custom_call.1} parent=1 // loop_body
      %s21 = ssub.s32 %s16, 1
      %s22 = ssub.s32 %s16, 2
      %s23 = sadd.s32 %s16, 1
      %s24 = ssub.s32 %s16, %s23
      %p25 = scmp.eq.s32.totalorder %s24, 0
      %s27 = sadd.s32 %s26, 1
      %s28 = scalar_select %p25, %s26, %s27
      %p31 = pneg %p25
      %p32 = scmp.eq.s32.totalorder %s16, 1
      %p33 = por %p31, %p32
      %p34 = scmp.ne.s32.totalorder %s26, %s29
      %p35 = scmp.eq.s32.totalorder %s16, 0
      %p36 = por %p34, %p35
      %p37 = scmp.ne.s32.totalorder %s26, %s29
      %p38 = scmp.eq.s32.totalorder %s21, 1
      %p39 = por %p37, %p38
      %p40 = scmp.ne.s32.totalorder %s29, %s30
      %p41 = scmp.eq.s32.totalorder %s21, 0
      %p42 = por %p40, %p41
      %p43 = scmp.ne.s32.totalorder %s29, %s30
      %p44 = scmp.eq.s32.totalorder %s22, 1
      %p45 = por %p43, %p44
      %p47 = scmp.ne.s32.totalorder %s30, %s46
      %p48 = scmp.eq.s32.totalorder %s22, 0
      %p49 = por %p47, %p48
      %s51 = sadd.s32 %s50, 1
      %p54 = scmp.eq.s32.totalorder %s16, 1
      %p55 = scmp.ne.s32.totalorder %s50, %s52
      %p56 = scmp.eq.s32.totalorder %s16, 0
      %p57 = por %p55, %p56
      %p58 = scmp.ne.s32.totalorder %s50, %s52
      %p59 = scmp.eq.s32.totalorder %s21, 1
      %p60 = por %p58, %p59
      %p61 = scmp.ne.s32.totalorder %s52, %s53
      %p62 = scmp.eq.s32.totalorder %s21, 0
      %p63 = por %p61, %p62
      %p64 = scmp.ne.s32.totalorder %s52, %s53
      %p65 = scmp.eq.s32.totalorder %s22, 1
      %p66 = por %p64, %p65
      %p68 = scmp.ne.s32.totalorder %s53, %s67
      %p69 = scmp.eq.s32.totalorder %s22, 0
      %p70 = por %p68, %p69
      %s72 = sadd.s32 %s71, 1
      %p75 = scmp.eq.s32.totalorder %s16, 1
      %p76 = scmp.ne.s32.totalorder %s71, %s73
      %p77 = scmp.eq.s32.totalorder %s16, 0
      %p78 = por %p76, %p77
      %p79 = scmp.ne.s32.totalorder %s71, %s73
      %p80 = scmp.eq.s32.totalorder %s21, 1
      %p81 = por %p79, %p80
      %p82 = scmp.ne.s32.totalorder %s73, %s74
      %p83 = scmp.eq.s32.totalorder %s21, 0
      %p84 = por %p82, %p83
      %p85 = scmp.ne.s32.totalorder %s73, %s74
      %p86 = scmp.eq.s32.totalorder %s22, 1
      %p87 = por %p85, %p86
      %p89 = scmp.ne.s32.totalorder %s74, %s88
      %p90 = scmp.eq.s32.totalorder %s22, 0
      %p91 = por %p89, %p90
      %s92 = ssub.s32 %s16, %s23
      %p93 = scmp.eq.s32.totalorder %s92, 0
      %s95 = sadd.s32 %s94, 1
      %s96 = scalar_select %p93, %s94, %s95
      %p99 = pneg %p93
      %p100 = scmp.eq.s32.totalorder %s16, 1
      %p101 = por %p99, %p100
      %p102 = scmp.ne.s32.totalorder %s94, %s97
      %p103 = scmp.eq.s32.totalorder %s16, 0
      %p104 = por %p102, %p103
      %p105 = scmp.ne.s32.totalorder %s94, %s97
      %p106 = scmp.eq.s32.totalorder %s21, 1
      %p107 = por %p105, %p106
      %p108 = scmp.ne.s32.totalorder %s97, %s98
      %p109 = scmp.eq.s32.totalorder %s21, 0
      %p110 = por %p108, %p109
      %p111 = scmp.ne.s32.totalorder %s97, %s98
      %p112 = scmp.eq.s32.totalorder %s22, 1
      %p113 = por %p111, %p112
      %p115 = scmp.ne.s32.totalorder %s98, %s114
      %p116 = scmp.eq.s32.totalorder %s22, 0
      %p117 = por %p115, %p116
      %p118 = scmp.le.s32.totalorder 1, %s16
      %p119 = scmp.lt.s32.totalorder %s16, 3
      %p120 = pnand %p118, %p119
      %p121 = pneg %p120
      // Predicated region
      $region9: #{tpu_custom_call.1} parent=5 // pred_check
        _
      $region10: #{tpu_custom_call.1} parent=5 // pred_check_branch
        %123 = sbr.rel (%p120) target = $region12
      $region11: #{tpu_custom_call.1} parent=5 // pred_region
        %s124 = ssub.s32 %s16, 1
        // Predicated region
        $region13: #{tpu_custom_call.1} parent=11 // pred_check
          %p125 = pneg %p63
        $region14: #{tpu_custom_call.1} parent=11 // pred_check_branch
          %127 = sbr.rel (%p125) target = $region16
        $region15: #{tpu_custom_call.1} parent=11 // pred_region
          %s129 = ssub.s32 2048, 2048
          %130 = vsyncadd [#allocation6], %s129
          %s131 = sshll.u32 [#allocation5], 4
          %s132 = int_to_ptr.vmem [resolvable:$true] %s131
          %137 = dma.hbm_to_vmem [thread:$0]  %s1, 2048, %s132, [#allocation6], 128, 128, 8
        $region16: #{tpu_custom_call.1} parent=11 // pred_fallthru
          _
        // Predicated region
        $region17: #{tpu_custom_call.1} parent=11 // pred_check
          %p138 = pneg %p84
        $region18: #{tpu_custom_call.1} parent=11 // pred_check_branch
          %140 = sbr.rel (%p138) target = $region20
        $region19: #{tpu_custom_call.1} parent=11 // pred_region
          _
        $region20: #{tpu_custom_call.1} parent=11 // pred_fallthru
          _
      $region12: #{tpu_custom_call.1} parent=5 // pred_fallthru
        _
      %p141 = scmp.lt.s32.totalorder %s16, 2
      // Predicated region
      $region21: #{tpu_custom_call.1} parent=5 // pred_check
        %p142 = pneg %p141
      $region22: #{tpu_custom_call.1} parent=5 // pred_check_branch
        %144 = sbr.rel (%p142) target = $region24
      $region23: #{tpu_custom_call.1} parent=5 // pred_region
        // Predicated region
        $region25: #{tpu_custom_call.1} parent=23 // pred_check
          %p145 = pneg %p36
        $region26: #{tpu_custom_call.1} parent=23 // pred_check_branch
          %147 = sbr.rel (%p145) target = $region28
        $region27: #{tpu_custom_call.1} parent=23 // pred_region
          %s148 = sand.u32 %s26, 1
          %s149 = scalar_lea.sflag [#allocation3], %s148
          %s150 = sand.u32 %s26, 1
          %s151 = smul.addr %s150, 64
          %s152 = scalar_lea.vmem [#allocation2], %s151
          %s153 = smul.u32 8, %s16
          %s155 = ssub.s32 1024, 1024
          %156 = vsyncadd %s149, %s155
          %s157 = smul.addr %s153, 128
          %s158 = scalar_lea.hbm %s0, %s157
          %s159 = sshll.u32 %s152, 4
          %s160 = int_to_ptr.vmem [resolvable:$true] %s159
          %165 = dma.hbm_to_vmem [thread:$0]  %s158, 1024, %s160, %s149, 128, 128, 8
        $region28: #{tpu_custom_call.1} parent=23 // pred_fallthru
          _
      $region24: #{tpu_custom_call.1} parent=5 // pred_fallthru
        _
      %p166 = scmp.le.s32.totalorder 1, %s16
      %p167 = scmp.lt.s32.totalorder %s16, 3
      %p168 = pnand %p166, %p167
      %p169 = pneg %p168
      // Predicated region
      $region29: #{tpu_custom_call.1} parent=5 // pred_check
        _
      $region30: #{tpu_custom_call.1} parent=5 // pred_check_branch
        %171 = sbr.rel (%p168) target = $region32
      $region31: #{tpu_custom_call.1} parent=5 // pred_region
        %s172 = ssub.s32 %s16, 1
        %s173 = sand.u32 %s29, 1
        %s174 = scalar_lea.sflag [#allocation3], %s173
        %s175 = sand.u32 %s29, 1
        %s176 = smul.addr %s175, 64
        %s177 = scalar_lea.vmem [#allocation2], %s176
        // Predicated region
        $region33: #{tpu_custom_call.1} parent=31 // pred_check
          %p178 = pneg %p42
        $region34: #{tpu_custom_call.1} parent=31 // pred_check_branch
          %180 = sbr.rel (%p178) target = $region36
        $region35: #{tpu_custom_call.1} parent=31 // pred_region
          %181 = dma.done %s174, 1024
        $region36: #{tpu_custom_call.1} parent=31 // pred_fallthru
          _
        // Predicated region
        $region37: #{tpu_custom_call.1} parent=31 // pred_check
          %p182 = pneg %p63
        $region38: #{tpu_custom_call.1} parent=31 // pred_check_branch
          %184 = sbr.rel (%p182) target = $region40
        $region39: #{tpu_custom_call.1} parent=31 // pred_region
          %185 = dma.done [#allocation6], 2048
        $region40: #{tpu_custom_call.1} parent=31 // pred_fallthru
          _
        %s186 = sand.u32 %s29, 1
        %s187 = scalar_lea.sflag [#allocation3], %s186
        %s188 = sand.u32 %s29, 1
        %s189 = smul.addr %s188, 64
        %s190 = scalar_lea.vmem [#allocation2], %s189
        %p191 = pneg %p42
        %p192 = pneg %p39
        %p193 = pneg %p63
        %p194 = pneg %p60
        %p195 = pneg %p84
        %p196 = pneg %p81
        %p197 = pneg %p110
        %p198 = pneg %p107
        %s199 = sand.u32 %s97, 1
        %s200 = scalar_lea.sflag [#allocation4], %s199
        %s201 = sand.u32 %s97, 1
        %s202 = smul.addr %s201, 64
        %s203 = scalar_lea.vmem [#allocation7], %s202
        %s204 = smul.u32 8, %s21
        %s205 = smul.u32 8, %s21
        %v206 = vld [vmem:[%s177] sm:$0xff]
        %v207 = vld [vmem:[%s177 + $0x8] sm:$0xff]
        %v208 = vld [vmem:[%s177 + $0x10] sm:$0xff]
        %v209 = vld [vmem:[%s177 + $0x18] sm:$0xff]
        %v210 = vld [vmem:[%s177 + $0x20] sm:$0xff]
        %v211 = vld [vmem:[%s177 + $0x28] sm:$0xff]
        %v212 = vld [vmem:[%s177 + $0x30] sm:$0xff]
        %v213 = vld [vmem:[%s177 + $0x38] sm:$0xff]
        %v214 = vld [vmem:[#allocation5] sm:$0xff]
        %v215 = vld [vmem:[#allocation5 + $0x8] sm:$0xff]
        %v216 = vld [vmem:[#allocation5 + $0x10] sm:$0xff]
        %v217 = vld [vmem:[#allocation5 + $0x18] sm:$0xff]
        %v218 = vld [vmem:[#allocation5 + $0x20] sm:$0xff]
        %v219 = vld [vmem:[#allocation5 + $0x28] sm:$0xff]
        %v220 = vld [vmem:[#allocation5 + $0x30] sm:$0xff]
        %v221 = vld [vmem:[#allocation5 + $0x38] sm:$0xff]
        %v222 = vld [vmem:[#allocation5 + $0x40] sm:$0xff]
        %v223 = vld [vmem:[#allocation5 + $0x48] sm:$0xff]
        %v224 = vld [vmem:[#allocation5 + $0x50] sm:$0xff]
        %v225 = vld [vmem:[#allocation5 + $0x58] sm:$0xff]
        %v226 = vld [vmem:[#allocation5 + $0x60] sm:$0xff]
        %v227 = vld [vmem:[#allocation5 + $0x68] sm:$0xff]
        %v228 = vld [vmem:[#allocation5 + $0x70] sm:$0xff]
        %v229 = vld [vmem:[#allocation5 + $0x78] sm:$0xff]
        %v230 = vld [vmem:[%s2] sm:$0x1]
        %v232 = vlaneseq
        %v233 = vshrl.u32 %v232, 7
        %v234 = vsub.s32 0, %v233
        %v235 = vrot.slane %v230, %v234
        %237 = vmatprep.subr.mxu0 0.0
        %238 = vmatpush1.msra.mxu0 %v214
        %239 = vmatprep.subr.mxu0 0.0
        %240 = vmatpush1.msra.mxu0 %v215
        %241 = vmatprep.subr.mxu0 0.0
        %242 = vmatpush1.msra.mxu0 %v216
        %243 = vmatprep.subr.mxu0 0.0
        %244 = vmatpush1.msra.mxu0 %v217
        %245 = vmatprep.subr.mxu0 0.0
        %246 = vmatpush1.msra.mxu0 %v218
        %247 = vmatprep.subr.mxu0 0.0
        %248 = vmatpush1.msra.mxu0 %v219
        %249 = vmatprep.subr.mxu0 0.0
        %250 = vmatpush1.msra.mxu0 %v220
        %251 = vmatprep.subr.mxu0 0.0
        %252 = vmatpush1.msra.mxu0 %v221
        %253 = vmatprep.subr.mxu0 0.0
        %254 = vmatpush1.msra.mxu0 %v222
        %255 = vmatprep.subr.mxu0 0.0
        %256 = vmatpush1.msra.mxu0 %v223
        %257 = vmatprep.subr.mxu0 0.0
        %258 = vmatpush1.msra.mxu0 %v224
        %259 = vmatprep.subr.mxu0 0.0
        %260 = vmatpush1.msra.mxu0 %v225
        %261 = vmatprep.subr.mxu0 0.0
        %262 = vmatpush1.msra.mxu0 %v226
        %263 = vmatprep.subr.mxu0 0.0
        %264 = vmatpush1.msra.mxu0 %v227
        %265 = vmatprep.subr.mxu0 0.0
        %266 = vmatpush1.msra.mxu0 %v228
        %267 = vmatprep.subr.mxu0 0.0
        %268 = vmatpush1.msra.mxu0 %v229
        %269 = vmatprep.subr.mxu0 0.0
        %270 = vmatpush1.msra.mxu0 0.0
        %271 = vmatprep.subr.mxu0 0.0
        %272 = vmatpush1.msra.mxu0 0.0
        %273 = vmatprep.subr.mxu0 0.0
        %274 = vmatpush1.msra.mxu0 0.0
        %275 = vmatprep.subr.mxu0 0.0
        %276 = vmatpush1.msra.mxu0 0.0
        %277 = vmatprep.subr.mxu0 0.0
        %278 = vmatpush1.msra.mxu0 0.0
        %279 = vmatprep.subr.mxu0 0.0
        %280 = vmatpush1.msra.mxu0 0.0
        %281 = vmatprep.subr.mxu0 0.0
        %282 = vmatpush1.msra.mxu0 0.0
        %283 = vmatprep.subr.mxu0 0.0
        %284 = vmatpush1.msra.mxu0 0.0
        %285 = vmatprep.subr.mxu0 0.0
        %286 = vmatpush1.msra.mxu0 0.0
        %287 = vmatprep.subr.mxu0 0.0
        %288 = vmatpush1.msra.mxu0 0.0
        %289 = vmatprep.subr.mxu0 0.0
        %290 = vmatpush1.msra.mxu0 0.0
        %291 = vmatprep.subr.mxu0 0.0
        %292 = vmatpush1.msra.mxu0 0.0
        %293 = vmatprep.subr.mxu0 0.0
        %294 = vmatpush1.msra.mxu0 0.0
        %295 = vmatprep.subr.mxu0 0.0
        %296 = vmatpush1.msra.mxu0 0.0
        %297 = vmatprep.subr.mxu0 0.0
        %298 = vmatpush1.msra.mxu0 0.0
        %299 = vmatprep.subr.mxu0 0.0
        %300 = vmatpush1.msra.mxu0 0.0
        %301 = vmatprep.mubr.f32.mxu0 0.0
        %302 = vmatmul.mubr.f32.gmra.mrb[0].mxu0 %v206
        %v303 = vpop.f32.mrb[0].mxu0
        %v304 = vadd.f32 %v235, %v303
        %v305 = vpop.f32.mrb[0].mxu0
        %306 = vmatprep.mubr.f32.mxu0 0.0
        %307 = vmatmul.mubr.f32.gmra.mrb[0].mxu0 %v207
        %v308 = vpop.f32.mrb[0].mxu0
        %v309 = vadd.f32 %v235, %v308
        %v310 = vpop.f32.mrb[0].mxu0
        %311 = vmatprep.mubr.f32.mxu0 0.0
        %312 = vmatmul.mubr.f32.gmra.mrb[0].mxu0 %v208
        %v313 = vpop.f32.mrb[0].mxu0
        %v314 = vadd.f32 %v235, %v313
        %v315 = vpop.f32.mrb[0].mxu0
        %316 = vmatprep.mubr.f32.mxu0 0.0
        %317 = vmatmul.mubr.f32.gmra.mrb[0].mxu0 %v209
        %v318 = vpop.f32.mrb[0].mxu0
        %v319 = vadd.f32 %v235, %v318
        %v320 = vpop.f32.mrb[0].mxu0
        %321 = vmatprep.mubr.f32.mxu0 0.0
        %322 = vmatmul.mubr.f32.gmra.mrb[0].mxu0 %v210
        %v323 = vpop.f32.mrb[0].mxu0
        %v324 = vadd.f32 %v235, %v323
        %v325 = vpop.f32.mrb[0].mxu0
        %326 = vmatprep.mubr.f32.mxu0 0.0
        %327 = vmatmul.mubr.f32.gmra.mrb[0].mxu0 %v211
        %v328 = vpop.f32.mrb[0].mxu0
        %v329 = vadd.f32 %v235, %v328
        %v330 = vpop.f32.mrb[0].mxu0
        %331 = vmatprep.mubr.f32.mxu0 0.0
        %332 = vmatmul.mubr.f32.gmra.mrb[0].mxu0 %v212
        %v333 = vpop.f32.mrb[0].mxu0
        %v334 = vadd.f32 %v235, %v333
        %v335 = vpop.f32.mrb[0].mxu0
        %336 = vmatprep.mubr.f32.mxu0 0.0
        %337 = vmatmul.mubr.f32.gmra.mrb[0].mxu0 %v213
        %v338 = vpop.f32.mrb[0].mxu0
        %v339 = vadd.f32 %v235, %v338
        %v340 = vpop.f32.mrb[0].mxu0
        %341 = vdwg.mxu0
        %v342 = vmax.f32 %v304, 0.0
        %v343 = vmax.f32 %v309, 0.0
        %v344 = vmax.f32 %v314, 0.0
        %v345 = vmax.f32 %v319, 0.0
        %v346 = vmax.f32 %v324, 0.0
        %v347 = vmax.f32 %v329, 0.0
        %v348 = vmax.f32 %v334, 0.0
        %v349 = vmax.f32 %v339, 0.0
        %350 = vst [vmem:[%s203] sm:$0xff] %v342
        %351 = vst [vmem:[%s203 + $0x8] sm:$0xff] %v343
        %352 = vst [vmem:[%s203 + $0x10] sm:$0xff] %v344
        %353 = vst [vmem:[%s203 + $0x18] sm:$0xff] %v345
        %354 = vst [vmem:[%s203 + $0x20] sm:$0xff] %v346
        %355 = vst [vmem:[%s203 + $0x28] sm:$0xff] %v347
        %356 = vst [vmem:[%s203 + $0x30] sm:$0xff] %v348
        %357 = vst [vmem:[%s203 + $0x38] sm:$0xff] %v349
        %s358 = sand.u32 %s97, 1
        %s359 = scalar_lea.sflag [#allocation4], %s358
        %s360 = sand.u32 %s97, 1
        %s361 = smul.addr %s360, 64
        %s362 = scalar_lea.vmem [#allocation7], %s361
        // Predicated region
        $region41: #{tpu_custom_call.1} parent=31 // pred_check
          %p363 = pneg %p107
        $region42: #{tpu_custom_call.1} parent=31 // pred_check_branch
          %365 = sbr.rel (%p363) target = $region44
        $region43: #{tpu_custom_call.1} parent=31 // pred_region
          %s366 = smul.u32 8, %s21
          %s368 = ssub.s32 1024, 1024
          %369 = vsyncadd %s359, %s368
          %s370 = smul.addr %s366, 128
          %s371 = scalar_lea.hbm %s3, %s370
          %s372 = sshll.u32 %s362, 4
          %s373 = int_to_ptr.vmem [resolvable:$true] %s372
          %378 = dma.vmem_to_hbm [thread:$0]  %s373, 1024, %s371, %s359, 128, 128, 8
        $region44: #{tpu_custom_call.1} parent=31 // pred_fallthru
          _
      $region32: #{tpu_custom_call.1} parent=5 // pred_fallthru
        _
      %p379 = scmp.le.s32.totalorder 2, %s16
      // Predicated region
      $region45: #{tpu_custom_call.1} parent=5 // pred_check
        %p380 = pneg %p379
      $region46: #{tpu_custom_call.1} parent=5 // pred_check_branch
        %382 = sbr.rel (%p380) target = $region48
      $region47: #{tpu_custom_call.1} parent=5 // pred_region
        %s383 = ssub.s32 %s16, 2
        // Predicated region
        $region49: #{tpu_custom_call.1} parent=47 // pred_check
          %p384 = pneg %p113
        $region50: #{tpu_custom_call.1} parent=47 // pred_check_branch
          %386 = sbr.rel (%p384) target = $region52
        $region51: #{tpu_custom_call.1} parent=47 // pred_region
          %s387 = sand.u32 %s98, 1
          %s388 = scalar_lea.sflag [#allocation4], %s387
          %s389 = sand.u32 %s98, 1
          %s390 = smul.addr %s389, 64
          %s391 = scalar_lea.vmem [#allocation7], %s390
          %392 = dma.done %s388, 1024
        $region52: #{tpu_custom_call.1} parent=47 // pred_fallthru
          _
      $region48: #{tpu_custom_call.1} parent=5 // pred_fallthru
        _
    $region6: #{tpu_custom_call.1} parent=1 // loop_footer
      %s20 = sadd.s32 1, %s16
    $region7: #{tpu_custom_call.1} parent=1 // loop_footer_branch
      %15 = sbr.rel target = $region3
    $region8: #{tpu_custom_call.1} parent=1 // loop_exit
      _
    %393 = vsyncpa [#allocation3], 1
    %s394 = scalar_lea.sflag [#allocation3], 1
    %395 = vsyncpa %s394, 1
    %396 = vsyncpa [#allocation6], 1
    %397 = vsyncpa [#allocation4], 1
    %s398 = scalar_lea.sflag [#allocation4], 1
    %399 = vsyncpa %s398, 1

</llo_original>
